<compile_context>
chip_gen: v7x
topology: tpu7x:2x2x1
jax: 0.10.0
libtpu: 0.0.40
codegen_flags: <defaults>
</compile_context>

<pallas_src>
import functools

import jax
import jax.numpy as jnp
from jax.experimental import pallas as pl
from jax.experimental.pallas import tpu as pltpu


def _focal_kernel(preds_ref, labels_ref, alpha_ref, out_ref, *,
                  gamma, valid_rows, needs_row_mask):
    """One grid step processes a (TM, C) tile of rows.

    preds_ref : (TM, C)   f32 VMEM   logits
    labels_ref: (TM, 1)   i32 VMEM   class index per row
    alpha_ref : (1, C)    f32 VMEM   per-class alpha weights (resident)
    out_ref   : (8, 128)  f32 VMEM   partial loss sum for this tile (replicated)
    """
    x = preds_ref[...]                                   # (TM, C)
    tm, c = x.shape

    # numerically stable log-softmax over the class (lane) axis
    row_max = jnp.max(x, axis=-1, keepdims=True)
    shifted = x - row_max
    sum_ex = jnp.sum(jnp.exp(shifted), axis=-1, keepdims=True)
    logp = shifted - jnp.log(sum_ex)                     # (TM, C)

    # gather log p and alpha at the target class via a one-hot lane mask
    labels = labels_ref[...]                             # (TM, 1) int32
    col = jax.lax.broadcasted_iota(jnp.int32, (tm, c), 1)
    onehot = col == labels                               # (TM, C) bool
    logp_y = jnp.sum(jnp.where(onehot, logp, 0.0), axis=-1, keepdims=True)
    p_y = jnp.exp(logp_y)
    alpha_y = jnp.sum(jnp.where(onehot, alpha_ref[...], 0.0),
                      axis=-1, keepdims=True)

    # (1 - p)^gamma : integer gamma -> plain VALU multiplies (exact, keeps the
    # EUP free for the softmax exp); non-integer gamma falls back to power.
    d = jnp.float32(1.0) - p_y
    if float(gamma) == int(gamma) and 0 <= int(gamma) <= 16:
        focal = jnp.ones_like(d)
        for _ in range(int(gamma)):
            focal = focal * d
    else:
        focal = jnp.power(d, jnp.float32(gamma))

    loss = -alpha_y * focal * logp_y                     # (TM, 1)

    if needs_row_mask:
        # zero out padded rows of the last tile (mask built in-kernel; no HBM
        # mask array and no extra DMA stream)
        row = (jax.lax.broadcasted_iota(jnp.int32, (tm, 1), 0)
               + pl.program_id(0) * tm)
        loss = jnp.where(row < valid_rows, loss, jnp.float32(0.0))

    # one partial sum per tile -> distinct output block per grid step, so the
    # grid axis can be "parallel" (both TensorCores on v7x).
    out_ref[...] = jnp.full(out_ref.shape, jnp.sum(loss), dtype=jnp.float32)


def focal_loss(preds, labels, *, alpha=0.25, gamma=2, num_classes=3,
               size_average=True):
    """preds: [B, N, C] or [B, C] float; labels: [B, N] or [B] int."""
    # ---- glue: flatten + build alpha vector (matches torch __init__) ----
    preds2d = preds.reshape(-1, preds.shape[-1]).astype(jnp.float32)
    labels1d = labels.reshape(-1).astype(jnp.int32)
    M, C = preds2d.shape
    assert C == num_classes

    if isinstance(alpha, (list, tuple)):
        assert len(alpha) == num_classes
        alpha_vec = jnp.asarray(alpha, dtype=jnp.float32)
    else:
        assert alpha < 1
        alpha_vec = jnp.concatenate(
            [jnp.full((1,), alpha, jnp.float32),
             jnp.full((num_classes - 1,), 1.0 - alpha, jnp.float32)])
    alpha_p = alpha_vec.reshape(1, C)

    def round_up(x, m):
        return ((x + m - 1) // m) * m

    # ---- row tiling: big TM to amortize ~0.35us/step overhead, capped so a
    # double-buffered (TM, C) f32 block stays well inside v5e's 16 MiB scoped
    # VMEM default even for large C ----
    bytes_per_row = max(C, 1) * 4
    vmem_budget_per_block = 4 * 1024 * 1024
    tm_cap = max(8, (vmem_budget_per_block // bytes_per_row) // 8 * 8)
    TM = max(8, min(1024, round_up(M, 8), tm_cap))
    m_pad = round_up(M, TM)
    num_tiles = m_pad // TM

    if m_pad != M:
        preds_p = jnp.zeros((m_pad, C), jnp.float32).at[:M].set(preds2d)
        labels_p = jnp.zeros((m_pad, 1), jnp.int32).at[:M, 0].set(labels1d)
    else:
        preds_p = preds2d
        labels_p = labels1d.reshape(m_pad, 1)

    kernel = functools.partial(_focal_kernel, gamma=gamma, valid_rows=M,
                               needs_row_mask=(m_pad != M))

    partials = pl.pallas_call(
        kernel,
        out_shape=jax.ShapeDtypeStruct((num_tiles * 8, 128), jnp.float32),
        grid_spec=pltpu.PrefetchScalarGridSpec(
            num_scalar_prefetch=0,
            grid=(num_tiles,),
            in_specs=[
                pl.BlockSpec((TM, C), lambda i: (i, 0)),   # logits (C un-padded)
                pl.BlockSpec((TM, 1), lambda i: (i, 0)),   # labels
                pl.BlockSpec((1, C), lambda i: (0, 0)),    # alpha (resident)
            ],
            out_specs=pl.BlockSpec((8, 128), lambda i: (i, 0)),
        ),
        compiler_params=pltpu.CompilerParams(
            dimension_semantics=("parallel",)),
    )(preds_p, labels_p, alpha_p)

    loss_sum = jnp.sum(partials.reshape(num_tiles, 8, 128)[:, 0, 0])
    if size_average:
        return loss_sum / jnp.float32(M)
    return loss_sum


def _focal_loss_ref(preds, labels, *, alpha=0.25, gamma=2, num_classes=3,
                    size_average=True):
    """Pure-JAX reference mirroring the PyTorch forward."""
    preds2d = preds.reshape(-1, preds.shape[-1]).astype(jnp.float32)
    labels1d = labels.reshape(-1)
    alpha_vec = jnp.concatenate(
        [jnp.full((1,), alpha, jnp.float32),
         jnp.full((num_classes - 1,), 1.0 - alpha, jnp.float32)])
    logp = jax.nn.log_softmax(preds2d, axis=1)
    logp_y = jnp.take_along_axis(logp, labels1d[:, None], axis=1)[:, 0]
    p_y = jnp.exp(logp_y)
    a_y = alpha_vec[labels1d]
    loss = -a_y * jnp.power(1.0 - p_y, gamma) * logp_y
    return loss.mean() if size_average else loss.sum()


if __name__ == "__main__":
    key = jax.random.PRNGKey(0)
    k1, k2 = jax.random.split(key)

    B, N, C = 2, 8, 3          # detection-style input: [B, N, C] logits
    preds = jax.random.normal(k1, (B, N, C), dtype=jnp.float32)
    labels = jax.random.randint(k2, (B, N), 0, C, dtype=jnp.int32)

    out = focal_loss(preds, labels, alpha=0.25, gamma=2, num_classes=C,
                     size_average=True)
    out = jax.block_until_ready(out)

    ref = _focal_loss_ref(preds, labels, alpha=0.25, gamma=2, num_classes=C,
                          size_average=True)
    assert jnp.allclose(out, ref, rtol=1e-5, atol=1e-5), (out, ref)
    print("KERNEL_OK")
</pallas_src>

<mosaic_0001>
module attributes {stable_mosaic.version = 11 : i64} {
  func.func @_focal_kernel(%arg0: i32, %arg1: memref<16x3xf32, #tpu.memory_space<vmem>>, %arg2: memref<16x1xi32, #tpu.memory_space<vmem>>, %arg3: memref<1x3xf32, #tpu.memory_space<vmem>>, %arg4: memref<8x128xf32, #tpu.memory_space<vmem>>) attributes {dimension_semantics = [#tpu.dimension_semantics<parallel>], iteration_bounds = array<i64: 1>, scalar_prefetch = 0 : i64, scratch_operands = 0 : i64, tpu.core_type = #tpu.core_type<tc>, window_params = [{transform_indices = @transform_0, window_bounds = array<i64: 16, 3>}, {transform_indices = @transform_1, window_bounds = array<i64: 16, 1>}, {pipeline_mode = #tpu.pipeline_mode<synchronous>, transform_indices = @transform_2, window_bounds = array<i64: 1, 3>}, {transform_indices = @transform_3, window_bounds = array<i64: 8, 128>}]} {
    %c0 = arith.constant 0 : index
    %c0_0 = arith.constant 0 : index
    %0 = vector.load %arg1[%c0, %c0_0] : memref<16x3xf32, #tpu.memory_space<vmem>>, vector<16x3xf32>
    %cst = arith.constant dense<0xFF800000> : vector<16xf32>
    %1 = vector.multi_reduction <maximumf>, %0, %cst [1] : vector<16x3xf32> to vector<16xf32>
    %2 = vector.shape_cast %1 : vector<16xf32> to vector<16x1xf32>
    %3 = vector.broadcast %2 : vector<16x1xf32> to vector<16x3xf32>
    %4 = arith.subf %0, %3 : vector<16x3xf32>
    %5 = math.exp %4 : vector<16x3xf32>
    %cst_1 = arith.constant dense<0.000000e+00> : vector<16xf32>
    %6 = vector.multi_reduction <add>, %5, %cst_1 [1] : vector<16x3xf32> to vector<16xf32>
    %7 = vector.shape_cast %6 : vector<16xf32> to vector<16x1xf32>
    %8 = math.log %7 : vector<16x1xf32>
    %9 = vector.broadcast %8 : vector<16x1xf32> to vector<16x3xf32>
    %10 = arith.subf %4, %9 : vector<16x3xf32>
    %c0_2 = arith.constant 0 : index
    %c0_3 = arith.constant 0 : index
    %11 = vector.load %arg2[%c0_2, %c0_3] : memref<16x1xi32, #tpu.memory_space<vmem>>, vector<16x1xi32>
    %12 = tpu.iota {dimensions = array<i32: 1>} : vector<16x3xi32>
    %13 = vector.broadcast %11 : vector<16x1xi32> to vector<16x3xi32>
    %14 = arith.cmpi eq, %12, %13 : vector<16x3xi32>
    %cst_4 = arith.constant 0.000000e+00 : f32
    %15 = vector.broadcast %cst_4 : f32 to vector<16x3xf32>
    %16 = arith.select %14, %10, %15 : vector<16x3xi1>, vector<16x3xf32>
    %cst_5 = arith.constant dense<0.000000e+00> : vector<16xf32>
    %17 = vector.multi_reduction <add>, %16, %cst_5 [1] : vector<16x3xf32> to vector<16xf32>
    %18 = vector.shape_cast %17 : vector<16xf32> to vector<16x1xf32>
    %19 = math.exp %18 : vector<16x1xf32>
    %c0_6 = arith.constant 0 : index
    %c0_7 = arith.constant 0 : index
    %20 = vector.load %arg3[%c0_6, %c0_7] : memref<1x3xf32, #tpu.memory_space<vmem>>, vector<1x3xf32>
    %cst_8 = arith.constant 0.000000e+00 : f32
    %21 = vector.shape_cast %20 : vector<1x3xf32> to vector<1x3xf32>
    %22 = vector.broadcast %21 : vector<1x3xf32> to vector<16x3xf32>
    %23 = vector.broadcast %cst_8 : f32 to vector<16x3xf32>
    %24 = arith.select %14, %22, %23 : vector<16x3xi1>, vector<16x3xf32>
    %cst_9 = arith.constant dense<0.000000e+00> : vector<16xf32>
    %25 = vector.multi_reduction <add>, %24, %cst_9 [1] : vector<16x3xf32> to vector<16xf32>
    %26 = vector.shape_cast %25 : vector<16xf32> to vector<16x1xf32>
    %cst_10 = arith.constant 1.000000e+00 : f32
    %27 = vector.broadcast %cst_10 : f32 to vector<16x1xf32>
    %28 = arith.subf %27, %19 : vector<16x1xf32>
    %cst_11 = arith.constant 1.000000e+00 : f32
    %29 = vector.broadcast %cst_11 : f32 to vector<16x1xf32>
    %30 = arith.mulf %29, %28 : vector<16x1xf32>
    %31 = arith.mulf %30, %28 : vector<16x1xf32>
    %cst_12 = arith.constant 0.000000e+00 : f32
    %32 = vector.broadcast %cst_12 : f32 to vector<16x1xf32>
    %33 = arith.subf %32, %26 : vector<16x1xf32>
    %34 = arith.mulf %33, %31 : vector<16x1xf32>
    %35 = arith.mulf %34, %18 : vector<16x1xf32>
    %36 = vector.shape_cast %35 : vector<16x1xf32> to vector<1x16x1xf32>
    %cst_13 = arith.constant dense<0.000000e+00> : vector<1xf32>
    %37 = vector.multi_reduction <add>, %36, %cst_13 [1, 2] : vector<1x16x1xf32> to vector<1xf32>
    %38 = vector.shape_cast %37 : vector<1xf32> to vector<1x1x1xf32>
    %39 = vector.extract %38[0, 0, 0] : f32 from vector<1x1x1xf32>
    %40 = vector.broadcast %39 : f32 to vector<8x128xf32>
    %c0_14 = arith.constant 0 : index
    %c0_15 = arith.constant 0 : index
    %41 = vector.load %arg4[%c0_14, %c0_15] : memref<8x128xf32, #tpu.memory_space<vmem>>, vector<8x128xf32>
    tpu.vector_store %arg4[%c0_14, %c0_15], %40 {strides = array<i32>} : memref<8x128xf32, #tpu.memory_space<vmem>>, vector<8x128xf32>,
    return
  }
  func.func @transform_0(%arg0: i32) -> (i32, i32) {
    %c0_i32 = arith.constant 0 : i32
    %c0_i32_0 = arith.constant 0 : i32
    return %arg0, %c0_i32 : i32, i32
  }
  func.func @transform_1(%arg0: i32) -> (i32, i32) {
    %c0_i32 = arith.constant 0 : i32
    %c0_i32_0 = arith.constant 0 : i32
    return %arg0, %c0_i32 : i32, i32
  }
  func.func @transform_2(%arg0: i32) -> (i32, i32) {
    %c0_i32 = arith.constant 0 : i32
    %c0_i32_0 = arith.constant 0 : i32
    %c0_i32_1 = arith.constant 0 : i32
    return %c0_i32, %c0_i32_0 : i32, i32
  }
  func.func @transform_3(%arg0: i32) -> (i32, i32) {
    %c0_i32 = arith.constant 0 : i32
    %c0_i32_0 = arith.constant 0 : i32
    return %arg0, %c0_i32 : i32, i32
  }
}

</mosaic_0001>

<llo_original>
// kernel: tpu_custom_call.1
$region0: #{tpu_custom_call.1}
  #allocation0 [shape = 'u32[]', space=smem, size = 0x4, offset = 0x4, fixed_abs, tag = 'smem constant byte address 0x4 - core index']
  #allocation1 [shape = 'u32[144,128]{1,0:T(1,128)}', space=vmem, size = 0x12000, scoped, tag = 'internal scratch']
  %s0 = inlined_call_operand.vmem [shape: f32[16,3], index: 0, kind: input, shape index: {}]
  %s1 = inlined_call_operand.vmem [shape: s32[16,1], index: 1, kind: input, shape index: {}]
  %s2 = inlined_call_operand.vmem [shape: f32[1,3], index: 2, kind: input, shape index: {}]
  %s3 = inlined_call_operand.hbm [shape: f32[8,128], index: 3, kind: output, shape index: {}]
  %s4 = sld [smem:[#allocation0]]
  $region22: #{tpu_custom_call.1} parent=0
    _
  %s6 = ssub.s32 1, %s4
  %s7 = scalar_select 0, %s6, %s4
  $region1: #{tpu_custom_call.1} parent=0
    #allocation2 [shape = 'u8[4096]{0}', space=vmem, size = 0x1000, scoped, tag = 'output window, operand 0, single buffered']
    #allocation3 [shape = 's32[1]{0}', space=sflag, size = 0x4, scoped, tag = 'scoped memory for tpu_custom_call.1']
    %8 = vsyncpa [#allocation3], 0
    // Predicated region
    $region2: #{tpu_custom_call.1} parent=1 // pred_check
      _
    $region3: #{tpu_custom_call.1} parent=1 // pred_check_branch
      %10 = sbr.rel (0) target = $region5
    $region4: #{tpu_custom_call.1} parent=1 // pred_region
      _
    $region5: #{tpu_custom_call.1} parent=1 // pred_fallthru
      _
    // Predicated region
    $region6: #{tpu_custom_call.1} parent=1 // pred_check
      _
    $region7: #{tpu_custom_call.1} parent=1 // pred_check_branch
      %12 = sbr.rel (0) target = $region9
    $region8: #{tpu_custom_call.1} parent=1 // pred_region
      _
    $region9: #{tpu_custom_call.1} parent=1 // pred_fallthru
      _
    // Predicated region
    $region10: #{tpu_custom_call.1} parent=1 // pred_check
      _
    $region11: #{tpu_custom_call.1} parent=1 // pred_check_branch
      %14 = sbr.rel (0) target = $region13
    $region12: #{tpu_custom_call.1} parent=1 // pred_region
      _
    $region13: #{tpu_custom_call.1} parent=1 // pred_fallthru
      _
    %v15 = vld [vmem:[%s0] sm:$0xff]
    %v16 = vld [vmem:[%s0 + $0x8] sm:$0xff]
    %vm17 = vcmask 23552
    %v18 = vsel %vm17, %v15, -inf
    %19 = vmax.xlane.f32.xlu0 %v18
    %v20 = vpop.xlane.xlu0 %19
    %v21 = vsel %vm17, %v16, -inf
    %22 = vmax.xlane.f32.xlu0 %v21
    %v23 = vpop.xlane.xlu0 %22
    %v24 = vsub.f32 %v15, %v20
    %v25 = vsub.f32 %v16, %v23
    %v26 = vmul.f32 %v24, 1.442695
    %v27 = vpow.pop %v26
    %v28 = vmul.f32 %v25, 1.442695
    %v29 = vpow.pop %v28
    %v30 = vsel %vm17, %v27, 0.0
    %31 = vadd.xlane.f32.xlu0 %v30
    %v32 = vpop.xlane.xlu0 %31
    %v33 = vsel %vm17, %v29, 0.0
    %34 = vadd.xlane.f32.xlu0 %v33
    %v35 = vpop.xlane.xlu0 %34
    %v36 = vlog2.pop %v32
    %v37 = vmul.f32 %v36, 0.6931472
    %v38 = vlog2.pop %v35
    %v39 = vmul.f32 %v38, 0.6931472
    %v40 = vsub.f32 %v24, %v37
    %v41 = vsub.f32 %v25, %v39
    %v42 = vld [vmem:[%s1] sm:$0xff]
    %v43 = vld [vmem:[%s1 + $0x8] sm:$0xff]
    %v44 = vlaneseq
    %v45 = vand.u32 %v44, 127
    %46 = vset.pattern.permute.xlu0 0
    %47 = vperm.xlu0 %46, %v42
    %v48 = vpop.permute.xlu0 %47
    %49 = vset.pattern.permute.xlu0 0
    %50 = vperm.xlu0 %49, %v43
    %v51 = vpop.permute.xlu0 %50
    %vm52 = vcmp.eq.s32.totalorder %v45, %v48
    %vm53 = vcmp.eq.s32.totalorder %v45, %v51
    %v54 = vsel %vm52, %v40, 0.0
    %v55 = vsel %vm53, %v41, 0.0
    %v56 = vsel %vm17, %v54, 0.0
    %57 = vadd.xlane.f32.xlu0 %v56
    %v58 = vpop.xlane.xlu0 %57
    %v59 = vsel %vm17, %v55, 0.0
    %60 = vadd.xlane.f32.xlu0 %v59
    %v61 = vpop.xlane.xlu0 %60
    %v62 = vmul.f32 %v58, 1.442695
    %v63 = vpow.pop %v62
    %v64 = vmul.f32 %v61, 1.442695
    %v65 = vpow.pop %v64
    %v66 = vld [vmem:[%s2] sm:$0x1]
    %v68 = vlaneseq
    %v69 = vshrl.u32 %v68, 7
    %v70 = vsub.s32 0, %v69
    %v71 = vrot.slane %v66, %v70
    %v73 = vsel %vm52, %v71, 0.0
    %v74 = vsel %vm53, %v71, 0.0
    %v75 = vsel %vm17, %v73, 0.0
    %76 = vadd.xlane.f32.xlu0 %v75
    %v77 = vpop.xlane.xlu0 %76
    %v78 = vsel %vm17, %v74, 0.0
    %79 = vadd.xlane.f32.xlu0 %v78
    %v80 = vpop.xlane.xlu0 %79
    %v81 = vsub.f32 1.0, %v63
    %v82 = vsub.f32 1.0, %v65
    %v83 = vmul.f32 %v81, %v81
    %v84 = vmul.f32 %v82, %v82
    %v85 = vsub.f32 0.0, %v77
    %v86 = vsub.f32 0.0, %v80
    %v87 = vmul.f32 %v85, %v83
    %v88 = vmul.f32 %v86, %v84
    %v89 = vmul.f32 %v87, %v58
    %v90 = vmul.f32 %v88, %v61
    %vm91 = vcmask 7168
    %v92 = vsel %vm91, %v89, 0.0
    %v93 = vsel %vm91, %v90, 0.0
    %v94 = vadd.f32 %v92, %v93
    %95 = vadd.xlane.f32.xlu0 %v94
    %v96 = vpop.xlane.xlu0 %95
    %v97 = vrot.slane %v96, 4
    %v98 = vadd.f32 %v96, %v97
    %v99 = vrot.slane %v98, 2
    %v100 = vadd.f32 %v98, %v99
    %v101 = vrot.slane %v100, 1
    %v102 = vadd.f32 %v100, %v101
    %s103 = vtos %v102
    %v104 = vstv %s103
    %105 = vst [vmem:[#allocation2] sm:$0xff] %v104
    // Predicated region
    $region14: #{tpu_custom_call.1} parent=1 // pred_check
      _
    $region15: #{tpu_custom_call.1} parent=1 // pred_check_branch
      %107 = sbr.rel (0) target = $region17
    $region16: #{tpu_custom_call.1} parent=1 // pred_region
      %s109 = ssub.s32 128, 128
      %110 = vsyncadd [#allocation3], %s109
      %s112 = sshll.u32 [#allocation2], 4
      %s113 = int_to_ptr.vmem [resolvable:$true] %s112
      %115 = dma.vmem_to_hbm [thread:$0]  %s113, 128, %s3, [#allocation3]
    $region17: #{tpu_custom_call.1} parent=1 // pred_fallthru
      _
    // Predicated region
    $region18: #{tpu_custom_call.1} parent=1 // pred_check
      _
    $region19: #{tpu_custom_call.1} parent=1 // pred_check_branch
      %117 = sbr.rel (0) target = $region21
    $region20: #{tpu_custom_call.1} parent=1 // pred_region
      %118 = dma.done [#allocation3], 128
    $region21: #{tpu_custom_call.1} parent=1 // pred_fallthru
      _
    %119 = vsyncpa [#allocation3], 1

</llo_original>
